<compile_context>
chip_gen: v5e
topology: v5e:2x2
jax: 0.10.0
libtpu: 0.0.40
codegen_flags: <defaults>
</compile_context>

<pallas_src>
from functools import partial

import numpy as np
import jax
import jax.numpy as jnp
from jax import lax
from jax.experimental import pallas as pl
from jax.experimental.pallas import tpu as pltpu

LANE = 128                     # lane width; channel dims padded up to a multiple of this
ROW_TILE = 1024                # rows per grid step (sublane tile)
VMEM_LIMIT = 32 * 1024 * 1024  # explicit scoped-VMEM limit (safe on v5e/v6e/v7x)


def _round_up(x, m):
    return ((x + m - 1) // m) * m


def _row_tile(n):
    """Row tile: <= ROW_TILE, multiple of 16 (bf16 sublane packing)."""
    return min(ROW_TILE, _round_up(n, 16))


# ----------------------------------------------------------------------------
# Pallas kernel 1: two-layer MLP head, batched over a leading "scale" axis.
#   out[s] = relu(x[s] @ W1[s] + b1[s]) @ W2[s] + b2[s]
# Inputs are fed in their original dtype and cast to bf16 in-kernel (no HBM pad/cast copy).
# ----------------------------------------------------------------------------
def _mlp2_kernel(x_ref, w1_ref, b1_ref, w2_ref, b2_ref, o_ref):
    x = x_ref[0].astype(jnp.bfloat16)
    h = jnp.dot(x, w1_ref[0], preferred_element_type=jnp.float32) + b1_ref[0]
    h = jnp.maximum(h, 0.0).astype(jnp.bfloat16)
    o = jnp.dot(h, w2_ref[0], preferred_element_type=jnp.float32) + b2_ref[0]
    o_ref[0] = o.astype(o_ref.dtype)


@partial(jax.jit, static_argnames=("dout",))
def mlp2_stacked(xs, w1, b1, w2, b2, *, dout):
    """xs: (S, N, din) float; w1: (S, din, dh) bf16; b1: (S, 1, dh) f32;
    w2: (S, dh, dout_p) bf16 (zero-padded output lanes); b2: (S, 1, dout_p) f32.
    Returns (S, N, dout) float32 logits.  Weights are pre-padded/cast at init time."""
    S, N, din = xs.shape
    dh = w1.shape[-1]
    dout_p = w2.shape[-1]
    tile = _row_tile(N)
    grid = (S, pl.cdiv(N, tile))

    out = pl.pallas_call(
        _mlp2_kernel,
        out_shape=jax.ShapeDtypeStruct((S, N, dout_p), jnp.float32),
        grid_spec=pltpu.PrefetchScalarGridSpec(
            num_scalar_prefetch=0,
            grid=grid,
            in_specs=[
                pl.BlockSpec((1, tile, din), lambda s, i: (s, i, 0)),
                pl.BlockSpec((1, din, dh), lambda s, i: (s, 0, 0)),
                pl.BlockSpec((1, 1, dh), lambda s, i: (s, 0, 0)),
                pl.BlockSpec((1, dh, dout_p), lambda s, i: (s, 0, 0)),
                pl.BlockSpec((1, 1, dout_p), lambda s, i: (s, 0, 0)),
            ],
            out_specs=pl.BlockSpec((1, tile, dout_p), lambda s, i: (s, i, 0)),
        ),
        compiler_params=pltpu.CompilerParams(
            dimension_semantics=("parallel", "parallel"),
            vmem_limit_bytes=VMEM_LIMIT),
    )(xs, w1, b1, w2, b2)
    return out[:, :, :dout]


# ----------------------------------------------------------------------------
# Pallas kernels 2 & 3: fused Attention module, batched over scales (two passes).
#
# Fused weight layout (width padded to LANE=128):
#   columns [0:cv]      -> 1x1 conv weights (conv1 for pseudo, conv2 for valid)
#   column  [cv]        -> folded fc1/fc2 @ fc3[:, 0]  (pseudo-gate logit contribution)
#   column  [cv+1]      -> folded fc1/fc2 @ fc3[:, 1]  (valid-gate logit contribution)
#   columns [cv+2:128]  -> zero padding
# fc biases (+ fc3 bias) are folded into the fused bias rows, so both sigmoid gates are
# single lanes of (zp + zv) -- no extra VPU multiplies or cross-lane reductions.
# ----------------------------------------------------------------------------
def _make_attn_stats_kernel(n_rows, tile):
    need_mask = (n_rows % tile) != 0

    def kernel(p_ref, v_ref, wp_ref, wv_ref, stat_ref):
        t = pl.program_id(1)

        @pl.when(t == 0)
        def _():
            stat_ref[...] = jnp.zeros_like(stat_ref)

        # Bias is excluded here (variance is shift-invariant; the mean shift is folded in
        # the wrapper), so masked/garbage rows contribute nothing once zeroed.
        zp = jnp.dot(p_ref[0].astype(jnp.bfloat16), wp_ref[...],
                     preferred_element_type=jnp.float32)
        zv = jnp.dot(v_ref[0].astype(jnp.bfloat16), wv_ref[...],
                     preferred_element_type=jnp.float32)
        if need_mask:  # last (partial) tile only -- static trace-time branch
            row = t * tile + lax.broadcasted_iota(jnp.int32, (tile, 1), 0)
            ok = row < n_rows
            zp = jnp.where(ok, zp, 0.0)
            zv = jnp.where(ok, zv, 0.0)
        stat_ref[0] += jnp.concatenate(
            [jnp.sum(zp, axis=0, keepdims=True),
             jnp.sum(zp * zp, axis=0, keepdims=True),
             jnp.sum(zv, axis=0, keepdims=True),
             jnp.sum(zv * zv, axis=0, keepdims=True)], axis=0)

    return kernel


def _make_attn_main_kernel(cv):
    def kernel(p_ref, v_ref, wp_ref, bp_ref, wv_ref, bv_ref, aff_ref, o_ref):
        zp = jnp.dot(p_ref[0].astype(jnp.bfloat16), wp_ref[...],
                     preferred_element_type=jnp.float32) + bp_ref[...]
        zv = jnp.dot(v_ref[0].astype(jnp.bfloat16), wv_ref[...],
                     preferred_element_type=jnp.float32) + bv_ref[...]
        aff = aff_ref[0]                        # (4, LANE): a1, c1, a2, c2
        a1, c1 = aff[0:1, :], aff[1:2, :]
        a2, c2 = aff[2:3, :], aff[3:4, :]
        # sigmoid gates: fc3 logits live in lanes [cv, cv+1] (folded weight columns/biases)
        gate = jax.nn.sigmoid(zp[:, cv:cv + 2] + zv[:, cv:cv + 2])
        pw = gate[:, 0:1]
        vw = gate[:, 1:2]
        # folded train-mode BatchNorm affine + ReLU, then gated sum (bf16 writeback)
        y1 = jnp.maximum(zp * a1 + c1, 0.0)
        y2 = jnp.maximum(zv * a2 + c2, 0.0)
        o_ref[0] = (y1 * pw + y2 * vw).astype(o_ref.dtype)

    return kernel


@jax.jit
def attention_forward_stacked(pack, pseudo, valid):
    """Fused Attention for all scales at once.

    pseudo: (S, N, cp), valid: (S, N, cv) -- any float dtype (cast to bf16 in-kernel).
    Returns (S, N, 128) bf16; lanes [0, cv) hold the attention output, lanes >= cv are
    don't-care (downstream consumers carry zero weight rows for them).
    BatchNorm uses exact per-scale batch statistics (training mode, biased var, eps=1e-5).
    """
    S, N, cp = pseudo.shape
    cv = valid.shape[-1]
    tile = _row_tile(N)
    n_tiles = pl.cdiv(N, tile)

    # ---- pass 1: BatchNorm statistics (scales parallel, row tiles accumulated)
    stats = pl.pallas_call(
        _make_attn_stats_kernel(N, tile),
        out_shape=jax.ShapeDtypeStruct((S, 4, LANE), jnp.float32),
        grid_spec=pltpu.PrefetchScalarGridSpec(
            num_scalar_prefetch=0,
            grid=(S, n_tiles),
            in_specs=[
                pl.BlockSpec((1, tile, cp), lambda s, t: (s, t, 0)),
                pl.BlockSpec((1, tile, cv), lambda s, t: (s, t, 0)),
                pl.BlockSpec((cp, LANE), lambda s, t: (0, 0)),
                pl.BlockSpec((cv, LANE), lambda s, t: (0, 0)),
            ],
            out_specs=pl.BlockSpec((1, 4, LANE), lambda s, t: (s, 0, 0)),
        ),
        compiler_params=pltpu.CompilerParams(
            dimension_semantics=("parallel", "arbitrary"),
            vmem_limit_bytes=VMEM_LIMIT),
    )(pseudo, valid, pack['wp'], pack['wv'])

    eps = 1e-5
    inv_n = jnp.float32(1.0 / N)
    rm1 = stats[:, 0, :] * inv_n
    var1 = jnp.maximum(stats[:, 1, :] * inv_n - rm1 * rm1, 0.0)
    rm2 = stats[:, 2, :] * inv_n
    var2 = jnp.maximum(stats[:, 3, :] * inv_n - rm2 * rm2, 0.0)
    a1 = lax.rsqrt(var1 + eps) * pack['bn1_g']
    c1 = pack['bn1_b'] - (rm1 + pack['bp']) * a1        # mean of conv output includes bias
    a2 = lax.rsqrt(var2 + eps) * pack['bn2_g']
    c2 = pack['bn2_b'] - (rm2 + pack['bv']) * a2
    aff = jnp.stack([a1, c1, a2, c2], axis=1)            # (S, 4, LANE)

    # ---- pass 2: fused matmuls + gate lanes + folded BN, lane-dense bf16 output
    out = pl.pallas_call(
        _make_attn_main_kernel(cv),
        out_shape=jax.ShapeDtypeStruct((S, N, LANE), jnp.bfloat16),
        grid_spec=pltpu.PrefetchScalarGridSpec(
            num_scalar_prefetch=0,
            grid=(S, n_tiles),
            in_specs=[
                pl.BlockSpec((1, tile, cp), lambda s, t: (s, t, 0)),
                pl.BlockSpec((1, tile, cv), lambda s, t: (s, t, 0)),
                pl.BlockSpec((cp, LANE), lambda s, t: (0, 0)),
                pl.BlockSpec((1, LANE), lambda s, t: (0, 0)),
                pl.BlockSpec((cv, LANE), lambda s, t: (0, 0)),
                pl.BlockSpec((1, LANE), lambda s, t: (0, 0)),
                pl.BlockSpec((1, 4, LANE), lambda s, t: (s, 0, 0)),
            ],
            out_specs=pl.BlockSpec((1, tile, LANE), lambda s, t: (s, t, 0)),
        ),
        compiler_params=pltpu.CompilerParams(
            dimension_semantics=("parallel", "parallel"),
            vmem_limit_bytes=VMEM_LIMIT),
    )(pseudo, valid, pack['wp'], pack['bp'], pack['wv'], pack['bv'], aff)
    return out


# ----------------------------------------------------------------------------
# Plain-JAX / host glue (data-dependent gathers, unique, losses)
# ----------------------------------------------------------------------------
def build_p2img_flat_index(batch_idx, point2img_index):
    """Host-side flat row index so that x[idx] == cat_b(x[batch_idx==b][p2img_idx[b]])."""
    bi = np.asarray(batch_idx)
    nb = int(bi.max()) + 1
    rows = []
    for b in range(nb):
        in_b = np.nonzero(bi == b)[0]
        rows.append(in_b[np.asarray(point2img_index[b])])
    return jnp.asarray(np.concatenate(rows, axis=0), dtype=jnp.int32)


def voxelize_labels(labels, full_coors):
    # TODO(synk): data-dependent shapes (unique without static size) -> kept eager; in a real
    # training loop this belongs in the data loader.
    lbxyz = jnp.concatenate([labels.reshape(-1, 1), full_coors], axis=-1)
    unq_lbxyz, count = jnp.unique(lbxyz, axis=0, return_counts=True)
    _, inv_ind = jnp.unique(unq_lbxyz[:, 1:], axis=0, return_inverse=True)
    inv_ind = inv_ind.reshape(-1)
    num_seg = int(inv_ind.max()) + 1
    seg_max = jax.ops.segment_max(count, inv_ind, num_segments=num_seg)
    is_max = count == seg_max[inv_ind]
    idx = jnp.arange(count.shape[0])
    label_ind = jax.ops.segment_max(jnp.where(is_max, idx, -1), inv_ind, num_segments=num_seg)
    return unq_lbxyz[:, 0][label_ind]


def ce_loss(logits, labels, class_weight, ignore):
    logp = jax.nn.log_softmax(logits, axis=1)
    valid = labels != ignore
    safe = jnp.where(valid, labels, 0).astype(jnp.int32)
    nll = -jnp.take_along_axis(logp, safe[:, None], axis=1)[:, 0]
    w = class_weight[safe] * valid.astype(jnp.float32)
    return jnp.sum(nll * w) / jnp.maximum(jnp.sum(w), 1e-12)


def seg_loss(logits, labels, class_weight, ignore):
    # TODO(synk): Lovasz_loss class definition is not provided in the reference module; omitted.
    return ce_loss(logits, labels, class_weight, ignore)


def kl_div_mean(log_input, target):
    safe_t = jnp.where(target > 0, target, 1.0)
    val = jnp.where(target > 0, target * (jnp.log(safe_t) - log_input), 0.0)
    return jnp.mean(val)   # F.kl_div default reduction='mean' (over all elements)


# ----------------------------------------------------------------------------
# Parameter initialization: weights are pre-fused / pre-padded / pre-cast once here,
# so the jitted forward never pays per-call pad/cast HBM traffic.
# ----------------------------------------------------------------------------
class KeyGen:
    def __init__(self, seed):
        self.key = jax.random.PRNGKey(seed)

    def __call__(self):
        self.key, sub = jax.random.split(self.key)
        return sub


def linear_params(kg, din, dout):
    bound = 1.0 / np.sqrt(din)
    w = jax.random.uniform(kg(), (din, dout), jnp.float32, -bound, bound)
    b = jax.random.uniform(kg(), (1, dout), jnp.float32, -bound, bound)
    return w, b


def _pack_mlp2(w1_list, b1_list, w2_list, b2_list, num_classes):
    """Stack per-scale 2-layer-MLP params; bf16 weights, f32 biases, output lanes padded."""
    S = len(w1_list)
    dh = w1_list[0].shape[1]
    dout_p = _round_up(num_classes, LANE)
    w1 = jnp.stack(w1_list).astype(jnp.bfloat16)
    b1 = jnp.stack(b1_list).reshape(S, 1, dh).astype(jnp.float32)
    w2 = jnp.zeros((S, dh, dout_p), jnp.bfloat16).at[:, :, :num_classes].set(
        jnp.stack(w2_list).astype(jnp.bfloat16))
    b2 = jnp.zeros((S, 1, dout_p), jnp.float32).at[:, :, :num_classes].set(
        jnp.stack(b2_list).reshape(S, 1, num_classes).astype(jnp.float32))
    return (w1, b1, w2, b2)


def attention_pack(kg, cp, cv):
    """Pre-fused / pre-padded Attention parameters with fc1/fc2/fc3 gates folded into two
    spare weight columns (lanes cv, cv+1)."""
    mid = cv // 4
    assert cv + 2 <= LANE, "fused channel width (+2 gate lanes) must fit in one 128-lane block"
    fc1_w, fc1_b = linear_params(kg, cp, mid)
    fc2_w, fc2_b = linear_params(kg, cv, mid)
    fc3_w, fc3_b = linear_params(kg, 2 * mid, 2)
    conv1_w, conv1_b = linear_params(kg, cp, cv)       # Conv1d(k=1) == per-point linear
    conv2_w, conv2_b = linear_params(kg, cv, cv)

    gp = fc1_w @ fc3_w[:mid, :]                        # (cp, 2): pseudo-branch gate columns
    gv = fc2_w @ fc3_w[mid:, :]                        # (cv, 2): valid-branch gate columns
    gp_b = fc1_b @ fc3_w[:mid, :] + fc3_b              # (1, 2): fc1 bias through fc3 + fc3 bias
    gv_b = fc2_b @ fc3_w[mid:, :]                      # (1, 2): fc2 bias through fc3

    def fuse_w(conv_w, gate_cols):
        w = jnp.zeros((conv_w.shape[0], LANE), jnp.float32)
        w = w.at[:, :cv].set(conv_w).at[:, cv:cv + 2].set(gate_cols)
        return w.astype(jnp.bfloat16)

    def fuse_b(conv_b, gate_b):
        b = jnp.zeros((1, LANE), jnp.float32)
        return b.at[:, :cv].set(conv_b).at[:, cv:cv + 2].set(gate_b)

    return dict(
        wp=fuse_w(conv1_w, gp), bp=fuse_b(conv1_b, gp_b),
        wv=fuse_w(conv2_w, gv), bv=fuse_b(conv2_b, gv_b),
        bn1_g=jnp.ones((1, LANE), jnp.float32), bn1_b=jnp.zeros((1, LANE), jnp.float32),
        bn2_g=jnp.ones((1, LANE), jnp.float32), bn2_b=jnp.zeros((1, LANE), jnp.float32),
    )


def init_params(config, seed=0):
    kg = KeyGen(seed)
    hidden = config['model_params']['hiden_size']
    num_classes = config['model_params']['num_classes']
    num_scales = len(config['model_params']['scale_list'])
    params = {}

    # multihead 3D classifiers (input = raw voxel features, width = hidden)
    w1l, b1l, w2l, b2l = [], [], [], []
    for _ in range(num_scales):
        w1, b1 = linear_params(kg, hidden, 128)
        w2, b2 = linear_params(kg, 128, num_classes)
        w1l.append(w1); b1l.append(b1); w2l.append(w2); b2l.append(b2)
    params['head3d'] = _pack_mlp2(w1l, b1l, w2l, b2l, num_classes)

    # multihead fuse classifiers (input = 128-lane fused attention output; rows >= hidden
    # correspond to garbage lanes -> zero weight rows)
    w1l, b1l, w2l, b2l = [], [], [], []
    for _ in range(num_scales):
        w1, b1 = linear_params(kg, hidden, 128)
        w1p = jnp.zeros((LANE, 128), jnp.float32).at[:hidden].set(w1)
        w2, b2 = linear_params(kg, 128, num_classes)
        w1l.append(w1p); b1l.append(b1); w2l.append(w2); b2l.append(b2)
    params['fuse_head'] = _pack_mlp2(w1l, b1l, w2l, b2l, num_classes)

    # leaners / fcs1 / fcs2 exist in __init__ but are unused in forward -> not created.

    # final classifier (input = concat over scales of the 128-lane fused features)
    cw1, cb1 = linear_params(kg, hidden * num_scales, 128)
    cw1p = jnp.zeros((num_scales * LANE, 128), jnp.float32)
    for s in range(num_scales):
        cw1p = cw1p.at[s * LANE:s * LANE + hidden].set(cw1[s * hidden:(s + 1) * hidden])
    cw2, cb2 = linear_params(kg, 128, num_classes)
    params['classifier'] = _pack_mlp2([cw1p], [cb1], [cw2], [cb2], num_classes)

    params['attention'] = attention_pack(kg, hidden, hidden)

    seg_num = np.asarray(config['dataset_params']['seg_labelweights'], dtype=np.float64)
    w = seg_num / seg_num.sum()
    params['class_weight'] = jnp.asarray(np.power(np.max(w) / w, 1.0 / 3.0), dtype=jnp.float32)
    return params


# ----------------------------------------------------------------------------
# xModalKD forward
# ----------------------------------------------------------------------------
def xmodalkd_forward(params, config, data_dict):
    scale_list = config['model_params']['scale_list']
    num_scales = len(scale_list)
    num_classes = config['model_params']['num_classes']
    lambda_xm = config['train_params']['lambda_xm']
    lambda_seg2d = config['train_params']['lambda_seg2d']
    ignore = config['dataset_params']['ignore_label']
    class_w = params['class_weight']

    batch_idx = data_dict['batch_idx']
    point2img_index = data_dict['point2img_index']
    img_label = data_dict['img_label']
    flat_p2img = build_p2img_flat_index(batch_idx, point2img_index)

    pts_feats = [data_dict['layer_{}'.format(i)]['pts_feat'] for i in range(num_scales)]
    hw1, hb1, hw2, hb2 = params['head3d']

    # ---- multihead 3D classifiers: single batched pallas_call when shapes allow
    if all(f.shape == pts_feats[0].shape for f in pts_feats):
        preds3d = mlp2_stacked(jnp.stack(pts_feats), hw1, hb1, hw2, hb2, dout=num_classes)
        pts_pred_full = [preds3d[i] for i in range(num_scales)]
    else:
        pts_pred_full = [
            mlp2_stacked(pts_feats[i][None], hw1[i:i + 1], hb1[i:i + 1],
                         hw2[i:i + 1], hb2[i:i + 1], dout=num_classes)[0]
            for i in range(num_scales)]

    # ---- per-scale voxel->point->image gather (single fused index), then ONE batched
    #      attention pass over all scales.
    # TODO(synk): the row gather could be fused into the attention kernels via
    # PrefetchScalarGridSpec + pl.Element row blocks; kept as jnp.take for clarity.
    pseudo_list, valid_list, pts_preds = [], [], []
    for idx, scale in enumerate(scale_list):
        coors_inv = data_dict['scale_{}'.format(scale)]['coors_inv']
        gather_idx = jnp.take(coors_inv, flat_p2img)   # x[coors_inv][p2img] == x[coors_inv[p2img]]
        pseudo_list.append(jnp.take(pts_feats[idx], gather_idx, axis=0))
        pts_preds.append(jnp.take(pts_pred_full[idx], gather_idx, axis=0))
        valid_list.append(data_dict['img_scale{}'.format(scale)])

    fuse_stack = attention_forward_stacked(params['attention'],
                                           jnp.stack(pseudo_list),
                                           jnp.stack(valid_list))   # (S, Nimg, 128) bf16

    # ---- multihead fuse classifiers: single batched pallas_call (all scales share N_img)
    fw1, fb1, fw2, fb2 = params['fuse_head']
    fuse_preds = mlp2_stacked(fuse_stack, fw1, fb1, fw2, fb2, dout=num_classes)

    # ---- losses
    loss = jnp.float32(0.0)
    for idx, scale in enumerate(scale_list):
        pts_label_full = voxelize_labels(data_dict['labels'],
                                         data_dict['layer_{}'.format(idx)]['full_coors'])
        seg_loss_3d = seg_loss(pts_pred_full[idx], pts_label_full, class_w, ignore)
        seg_loss_2d = seg_loss(fuse_preds[idx], img_label, class_w, ignore)
        loss = loss + seg_loss_3d + seg_loss_2d * lambda_seg2d / num_scales
        xm = kl_div_mean(jax.nn.log_softmax(pts_preds[idx], axis=1),
                         jax.nn.softmax(fuse_preds[idx], axis=1))
        loss = loss + xm * lambda_xm / num_scales

    # ---- final classifier on concatenated fused features (128-lane slabs per scale;
    #      classifier w1 carries zero rows for the garbage lanes)
    n_img = fuse_stack.shape[1]
    fuse_cat = jnp.swapaxes(fuse_stack, 0, 1).reshape(n_img, num_scales * LANE)
    cw1, cb1, cw2, cb2 = params['classifier']
    img_seg_logits = mlp2_stacked(fuse_cat[None], cw1, cb1, cw2, cb2, dout=num_classes)[0]
    loss = loss + seg_loss(img_seg_logits, img_label, class_w, ignore)
    data_dict['loss'] = data_dict['loss'] + loss
    return data_dict


# ----------------------------------------------------------------------------
# Main: deterministic synthetic data, run once, print KERNEL_OK
# ----------------------------------------------------------------------------
if __name__ == "__main__":
    num_classes = 10
    hidden = 64
    scale_list = [2, 4]
    config = {
        'model_params': {'hiden_size': hidden, 'scale_list': scale_list, 'num_classes': num_classes},
        'train_params': {'lambda_xm': 0.05, 'lambda_seg2d': 1.0},
        'dataset_params': {'seg_labelweights': np.arange(1, num_classes + 1, dtype=np.float64),
                           'ignore_label': 255},
    }
    params = init_params(config, seed=0)

    kg = KeyGen(1)

    batch_size = 2
    pts_per_batch = 32          # Npts = 64
    n_vox = 32                  # voxels per layer
    n_img_per_batch = 16        # Nimg = 32
    n_pts = batch_size * pts_per_batch

    batch_idx = jnp.concatenate([jnp.full((pts_per_batch,), b, dtype=jnp.int32)
                                 for b in range(batch_size)])
    labels = jax.random.randint(kg(), (n_pts,), 0, num_classes).astype(jnp.int32)
    labels = labels.at[3].set(255).at[40].set(255)   # a couple of ignored points

    point2img_index = [jax.random.permutation(kg(), pts_per_batch)[:n_img_per_batch].astype(jnp.int32)
                       for _ in range(batch_size)]
    n_img = batch_size * n_img_per_batch
    img_label = jax.random.randint(kg(), (n_img,), 0, num_classes).astype(jnp.int32)

    # distinct, lexicographically sorted voxel coordinates [batch, x, y, z]
    vox_coords = np.stack([np.arange(n_vox) // 16,
                           np.zeros(n_vox, np.int64),
                           np.zeros(n_vox, np.int64),
                           np.arange(n_vox) % 16], axis=1).astype(np.int32)

    data_dict = {
        'batch_idx': batch_idx,
        'point2img_index': point2img_index,
        'labels': labels,
        'img_label': img_label,
        'loss': jnp.float32(0.0),
    }
    for idx, scale in enumerate(scale_list):
        # every voxel covered at least once -> unique(full_coors) has n_vox rows
        extra = jax.random.randint(kg(), (n_pts - n_vox,), 0, n_vox)
        coors_inv = jax.random.permutation(kg(), jnp.concatenate([jnp.arange(n_vox), extra])).astype(jnp.int32)
        full_coors = jnp.asarray(vox_coords)[coors_inv]
        data_dict['img_scale{}'.format(scale)] = jax.random.normal(kg(), (n_img, hidden), jnp.float32)
        data_dict['layer_{}'.format(idx)] = {
            'pts_feat': jax.random.normal(kg(), (n_vox, hidden), jnp.float32),
            'full_coors': full_coors,
        }
        data_dict['scale_{}'.format(scale)] = {'coors_inv': coors_inv}

    out = xmodalkd_forward(params, config, data_dict)
    loss = jax.block_until_ready(out['loss'])
    assert np.isfinite(np.asarray(loss)), "loss is not finite"
    print("KERNEL_OK")
</pallas_src>

<mosaic_0001>
module attributes {stable_mosaic.version = 11 : i64} {
  func.func @_mlp2_kernel(%arg0: i32, %arg1: i32, %arg2: memref<1x32x64xf32, #tpu.memory_space<vmem>>, %arg3: memref<1x64x128xbf16, #tpu.memory_space<vmem>>, %arg4: memref<1x1x128xf32, #tpu.memory_space<vmem>>, %arg5: memref<1x128x128xbf16, #tpu.memory_space<vmem>>, %arg6: memref<1x1x128xf32, #tpu.memory_space<vmem>>, %arg7: memref<1x32x128xf32, #tpu.memory_space<vmem>>) attributes {dimension_semantics = [#tpu.dimension_semantics<parallel>, #tpu.dimension_semantics<parallel>], iteration_bounds = array<i64: 2, 1>, scalar_prefetch = 0 : i64, scratch_operands = 0 : i64, tpu.core_type = #tpu.core_type<tc>, window_params = [{transform_indices = @transform_0, window_bounds = array<i64: 1, 32, 64>}, {transform_indices = @transform_1, window_bounds = array<i64: 1, 64, 128>}, {transform_indices = @transform_2, window_bounds = array<i64: 1, 1, 128>}, {transform_indices = @transform_3, window_bounds = array<i64: 1, 128, 128>}, {transform_indices = @transform_4, window_bounds = array<i64: 1, 1, 128>}, {transform_indices = @transform_5, window_bounds = array<i64: 1, 32, 128>}]} {
    %c0 = arith.constant 0 : index
    %c0_0 = arith.constant 0 : index
    %c0_1 = arith.constant 0 : index
    %0 = vector.load %arg2[%c0, %c0_0, %c0_1] : memref<1x32x64xf32, #tpu.memory_space<vmem>>, vector<1x32x64xf32>
    %1 = vector.shape_cast %0 : vector<1x32x64xf32> to vector<32x64xf32>
    %2 = arith.truncf %1 : vector<32x64xf32> to vector<32x64xbf16>
    %c0_2 = arith.constant 0 : index
    %c0_3 = arith.constant 0 : index
    %c0_4 = arith.constant 0 : index
    %3 = vector.load %arg3[%c0_2, %c0_3, %c0_4] : memref<1x64x128xbf16, #tpu.memory_space<vmem>>, vector<1x64x128xbf16>
    %4 = vector.shape_cast %3 : vector<1x64x128xbf16> to vector<64x128xbf16>
    %cst = arith.constant dense<0.000000e+00> : vector<32x128xf32>
    %5 = tpu.matmul %2, %4, %cst {dimension_numbers = #tpu.dot_dimension_numbers<[1], [0], [0], [1], [0, 0, 1, 1], [], []>} : vector<32x64xbf16>, vector<64x128xbf16>, vector<32x128xf32> -> vector<32x128xf32>
    %c0_5 = arith.constant 0 : index
    %c0_6 = arith.constant 0 : index
    %c0_7 = arith.constant 0 : index
    %6 = vector.load %arg4[%c0_5, %c0_6, %c0_7] : memref<1x1x128xf32, #tpu.memory_space<vmem>>, vector<1x1x128xf32>
    %7 = vector.shape_cast %6 : vector<1x1x128xf32> to vector<1x128xf32>
    %8 = vector.broadcast %7 : vector<1x128xf32> to vector<32x128xf32>
    %9 = arith.addf %5, %8 : vector<32x128xf32>
    %cst_8 = arith.constant 0.000000e+00 : f32
    %10 = vector.broadcast %cst_8 : f32 to vector<32x128xf32>
    %11 = arith.maximumf %9, %10 : vector<32x128xf32>
    %12 = arith.truncf %11 : vector<32x128xf32> to vector<32x128xbf16>
    %c0_9 = arith.constant 0 : index
    %c0_10 = arith.constant 0 : index
    %c0_11 = arith.constant 0 : index
    %13 = vector.load %arg5[%c0_9, %c0_10, %c0_11] : memref<1x128x128xbf16, #tpu.memory_space<vmem>>, vector<1x128x128xbf16>
    %14 = vector.shape_cast %13 : vector<1x128x128xbf16> to vector<128x128xbf16>
    %cst_12 = arith.constant dense<0.000000e+00> : vector<32x128xf32>
    %15 = tpu.matmul %12, %14, %cst_12 {dimension_numbers = #tpu.dot_dimension_numbers<[1], [0], [0], [1], [0, 0, 1, 1], [], []>} : vector<32x128xbf16>, vector<128x128xbf16>, vector<32x128xf32> -> vector<32x128xf32>
    %c0_13 = arith.constant 0 : index
    %c0_14 = arith.constant 0 : index
    %c0_15 = arith.constant 0 : index
    %16 = vector.load %arg6[%c0_13, %c0_14, %c0_15] : memref<1x1x128xf32, #tpu.memory_space<vmem>>, vector<1x1x128xf32>
    %17 = vector.shape_cast %16 : vector<1x1x128xf32> to vector<1x128xf32>
    %18 = vector.broadcast %17 : vector<1x128xf32> to vector<32x128xf32>
    %19 = arith.addf %15, %18 : vector<32x128xf32>
    %c0_16 = arith.constant 0 : index
    %c0_17 = arith.constant 0 : index
    %c0_18 = arith.constant 0 : index
    %20 = vector.load %arg7[%c0_16, %c0_17, %c0_18] : memref<1x32x128xf32, #tpu.memory_space<vmem>>, vector<1x32x128xf32>
    %21 = vector.shape_cast %20 : vector<1x32x128xf32> to vector<32x128xf32>
    %22 = vector.shape_cast %19 : vector<32x128xf32> to vector<1x32x128xf32>
    tpu.vector_store %arg7[%c0_16, %c0_17, %c0_18], %22 {strides = array<i32>} : memref<1x32x128xf32, #tpu.memory_space<vmem>>, vector<1x32x128xf32>,
    return
  }
  func.func @transform_0(%arg0: i32, %arg1: i32) -> (i32, i32, i32) {
    %c0_i32 = arith.constant 0 : i32
    %c0_i32_0 = arith.constant 0 : i32
    return %arg0, %arg1, %c0_i32 : i32, i32, i32
  }
  func.func @transform_1(%arg0: i32, %arg1: i32) -> (i32, i32, i32) {
    %c0_i32 = arith.constant 0 : i32
    %c0_i32_0 = arith.constant 0 : i32
    %c0_i32_1 = arith.constant 0 : i32
    return %arg0, %c0_i32, %c0_i32_0 : i32, i32, i32
  }
  func.func @transform_2(%arg0: i32, %arg1: i32) -> (i32, i32, i32) {
    %c0_i32 = arith.constant 0 : i32
    %c0_i32_0 = arith.constant 0 : i32
    %c0_i32_1 = arith.constant 0 : i32
    return %arg0, %c0_i32, %c0_i32_0 : i32, i32, i32
  }
  func.func @transform_3(%arg0: i32, %arg1: i32) -> (i32, i32, i32) {
    %c0_i32 = arith.constant 0 : i32
    %c0_i32_0 = arith.constant 0 : i32
    %c0_i32_1 = arith.constant 0 : i32
    return %arg0, %c0_i32, %c0_i32_0 : i32, i32, i32
  }
  func.func @transform_4(%arg0: i32, %arg1: i32) -> (i32, i32, i32) {
    %c0_i32 = arith.constant 0 : i32
    %c0_i32_0 = arith.constant 0 : i32
    %c0_i32_1 = arith.constant 0 : i32
    return %arg0, %c0_i32, %c0_i32_0 : i32, i32, i32
  }
  func.func @transform_5(%arg0: i32, %arg1: i32) -> (i32, i32, i32) {
    %c0_i32 = arith.constant 0 : i32
    %c0_i32_0 = arith.constant 0 : i32
    return %arg0, %arg1, %c0_i32 : i32, i32, i32
  }
}

</mosaic_0001>

<llo_original>
// kernel: mlp2_stacked.1
$region0: #{mlp2_stacked.1}
  #allocation0 [shape = 'u32[]', space=smem, size = 0x4, offset = 0x4, fixed_abs, tag = 'smem constant byte address 0x4 - core index']
  #allocation1 [shape = 'u32[72,128]{1,0:T(1,128)}', space=vmem, size = 0x9000, scoped, tag = 'internal scratch']
  %s0 = inlined_call_operand.hbm [shape: f32[2,32,64], index: 0, kind: input, shape index: {}]
  %s1 = inlined_call_operand.hbm [shape: bf16[2,64,128], index: 1, kind: input, shape index: {}]
  %s2 = inlined_call_operand.hbm [shape: f32[2,1,128], index: 2, kind: input, shape index: {}]
  %s3 = inlined_call_operand.hbm [shape: bf16[2,128,128], index: 3, kind: input, shape index: {}]
  %s4 = inlined_call_operand.vmem [shape: f32[2,1,128], index: 4, kind: input, shape index: {}]
  %s5 = inlined_call_operand.vmem [shape: f32[2,32,128], index: 5, kind: output, shape index: {}]
  %s6 = sld [smem:[#allocation0]]
  $region69: #{mlp2_stacked.1} parent=0
    _
  %s8 = ssub.s32 1, %s6
  %s9 = scalar_select 0, %s8, %s6
  $region1: #{mlp2_stacked.1} parent=0
    #allocation2 [shape = 'u8[32768]{0}', space=vmem, size = 0x8000, scoped, tag = 'input window, operand 0']
    #allocation3 [shape = 's32[2]{0}', space=sflag, size = 0x8, scoped, tag = 'scoped memory for mlp2_stacked.1']
    #allocation4 [shape = 'u8[32768]{0}', space=vmem, size = 0x8000, scoped, tag = 'input window, operand 1']
    #allocation5 [shape = 's32[2]{0}', space=sflag, size = 0x8, scoped, tag = 'scoped memory for mlp2_stacked.1']
    #allocation6 [shape = 'u8[1024]{0}', space=vmem, size = 0x400, scoped, tag = 'input window, operand 2']
    #allocation7 [shape = 'u8[65536]{0}', space=vmem, size = 0x10000, scoped, tag = 'input window, operand 3']
    #allocation8 [shape = 's32[2]{0}', space=sflag, size = 0x8, scoped, tag = 'scoped memory for mlp2_stacked.1']
    %10 = vsyncpa [#allocation3], 0
    %s11 = scalar_lea.sflag [#allocation3], 1
    %12 = vsyncpa %s11, 0
    %13 = vsyncpa [#allocation5], 0
    %s14 = scalar_lea.sflag [#allocation5], 1
    %15 = vsyncpa %s14, 0
    %16 = vsyncpa [#allocation8], 0
    %s17 = scalar_lea.sflag [#allocation8], 1
    %18 = vsyncpa %s17, 0
    loop: start=0, step=1, limit=4
    $region2: #{mlp2_stacked.1} parent=1 // loop_pre_header
      _
    $region3: #{mlp2_stacked.1} parent=1 // loop_header
      %s20 = sphi 0, %s24
      %p21 = scmp.ge.s32.totalorder %s20, 4
      %s27 = sphi 0, %s39
      %s28 = sphi 0, %s35
      %s29 = sphi 0, %s27
      %s30 = sphi 0, %s28
      %s31 = sphi 0, %s29
      %s32 = sphi 0, %s30
      %s44 = sphi 0, %s46
      %s47 = sphi 0, %s44
      %s48 = sphi 0, %s47
      %s64 = sphi 0, %s48
      %s70 = sphi 0, %s72
      %s73 = sphi 0, %s70
      %s74 = sphi 0, %s73
      %s90 = sphi 0, %s74
      %s96 = sphi 0, %s98
      %s99 = sphi 0, %s96
      %s100 = sphi 0, %s99
      %s116 = sphi 0, %s100
      %s122 = sphi 0, %s124
      %s125 = sphi 0, %s122
      %s126 = sphi 0, %s125
      %s142 = sphi 0, %s126
      %s148 = sphi 0, %s150
      %s151 = sphi 0, %s148
      %s152 = sphi 0, %s151
      %s168 = sphi 0, %s152
      %s176 = sphi 0, %s178
      %s179 = sphi 0, %s176
      %s180 = sphi 0, %s179
      %s196 = sphi 0, %s180
    $region4: #{mlp2_stacked.1} parent=1 // loop_header_branch
      %23 = sbr.rel (%p21) target = $region8
    $region5: #{mlp2_stacked.1} parent=1 // loop_body
      %s25 = ssub.s32 %s20, 1
      %s26 = ssub.s32 %s20, 2
      %s33 = sadd.s32 1, %s28
      %p34 = scmp.ge.s32.totalorder %s33, 1
      %s35 = scalar_select %p34, 0, %s33
      %s36 = sadd.s32 1, %s27
      %s37 = scalar_select %p34, %s36, %s27
      %p38 = scmp.ge.s32.totalorder %s37, 2
      %s39 = scalar_select %p38, 0, %s37
      %s40 = ssub.s32 %s27, %s39
      %s41 = ssub.s32 %s28, %s35
      %s42 = sor.u32 %s40, %s41
      %p43 = scmp.eq.s32.totalorder %s42, 0
      %s45 = sadd.s32 %s44, 1
      %s46 = scalar_select %p43, %s44, %s45
      %p49 = pneg %p43
      %p50 = scmp.eq.s32.totalorder %s20, 1
      %p51 = por %p49, %p50
      %p52 = scmp.ne.s32.totalorder %s44, %s47
      %p53 = scmp.eq.s32.totalorder %s20, 0
      %p54 = por %p52, %p53
      %p55 = scmp.ne.s32.totalorder %s44, %s47
      %p56 = scmp.eq.s32.totalorder %s25, 1
      %p57 = por %p55, %p56
      %p58 = scmp.ne.s32.totalorder %s47, %s48
      %p59 = scmp.eq.s32.totalorder %s25, 0
      %p60 = por %p58, %p59
      %p61 = scmp.ne.s32.totalorder %s47, %s48
      %p62 = scmp.eq.s32.totalorder %s26, 1
      %p63 = por %p61, %p62
      %p65 = scmp.ne.s32.totalorder %s48, %s64
      %p66 = scmp.eq.s32.totalorder %s26, 0
      %p67 = por %p65, %p66
      %s68 = ssub.s32 %s27, %s39
      %p69 = scmp.eq.s32.totalorder %s68, 0
      %s71 = sadd.s32 %s70, 1
      %s72 = scalar_select %p69, %s70, %s71
      %p75 = pneg %p69
      %p76 = scmp.eq.s32.totalorder %s20, 1
      %p77 = por %p75, %p76
      %p78 = scmp.ne.s32.totalorder %s70, %s73
      %p79 = scmp.eq.s32.totalorder %s20, 0
      %p80 = por %p78, %p79
      %p81 = scmp.ne.s32.totalorder %s70, %s73
      %p82 = scmp.eq.s32.totalorder %s25, 1
      %p83 = por %p81, %p82
      %p84 = scmp.ne.s32.totalorder %s73, %s74
      %p85 = scmp.eq.s32.totalorder %s25, 0
      %p86 = por %p84, %p85
      %p87 = scmp.ne.s32.totalorder %s73, %s74
      %p88 = scmp.eq.s32.totalorder %s26, 1
      %p89 = por %p87, %p88
      %p91 = scmp.ne.s32.totalorder %s74, %s90
      %p92 = scmp.eq.s32.totalorder %s26, 0
      %p93 = por %p91, %p92
      %s94 = ssub.s32 %s27, %s39
      %p95 = scmp.eq.s32.totalorder %s94, 0
      %s97 = sadd.s32 %s96, 1
      %s98 = scalar_select %p95, %s96, %s97
      %p101 = pneg %p95
      %p102 = scmp.eq.s32.totalorder %s20, 1
      %p103 = por %p101, %p102
      %p104 = scmp.ne.s32.totalorder %s96, %s99
      %p105 = scmp.eq.s32.totalorder %s20, 0
      %p106 = por %p104, %p105
      %p107 = scmp.ne.s32.totalorder %s96, %s99
      %p108 = scmp.eq.s32.totalorder %s25, 1
      %p109 = por %p107, %p108
      %p110 = scmp.ne.s32.totalorder %s99, %s100
      %p111 = scmp.eq.s32.totalorder %s25, 0
      %p112 = por %p110, %p111
      %p113 = scmp.ne.s32.totalorder %s99, %s100
      %p114 = scmp.eq.s32.totalorder %s26, 1
      %p115 = por %p113, %p114
      %p117 = scmp.ne.s32.totalorder %s100, %s116
      %p118 = scmp.eq.s32.totalorder %s26, 0
      %p119 = por %p117, %p118
      %s120 = ssub.s32 %s27, %s39
      %p121 = scmp.eq.s32.totalorder %s120, 0
      %s123 = sadd.s32 %s122, 1
      %s124 = scalar_select %p121, %s122, %s123
      %p127 = pneg %p121
      %p128 = scmp.eq.s32.totalorder %s20, 1
      %p129 = por %p127, %p128
      %p130 = scmp.ne.s32.totalorder %s122, %s125
      %p131 = scmp.eq.s32.totalorder %s20, 0
      %p132 = por %p130, %p131
      %p133 = scmp.ne.s32.totalorder %s122, %s125
      %p134 = scmp.eq.s32.totalorder %s25, 1
      %p135 = por %p133, %p134
      %p136 = scmp.ne.s32.totalorder %s125, %s126
      %p137 = scmp.eq.s32.totalorder %s25, 0
      %p138 = por %p136, %p137
      %p139 = scmp.ne.s32.totalorder %s125, %s126
      %p140 = scmp.eq.s32.totalorder %s26, 1
      %p141 = por %p139, %p140
      %p143 = scmp.ne.s32.totalorder %s126, %s142
      %p144 = scmp.eq.s32.totalorder %s26, 0
      %p145 = por %p143, %p144
      %s146 = ssub.s32 %s27, %s39
      %p147 = scmp.eq.s32.totalorder %s146, 0
      %s149 = sadd.s32 %s148, 1
      %s150 = scalar_select %p147, %s148, %s149
      %p153 = pneg %p147
      %p154 = scmp.eq.s32.totalorder %s20, 1
      %p155 = por %p153, %p154
      %p156 = scmp.ne.s32.totalorder %s148, %s151
      %p157 = scmp.eq.s32.totalorder %s20, 0
      %p158 = por %p156, %p157
      %p159 = scmp.ne.s32.totalorder %s148, %s151
      %p160 = scmp.eq.s32.totalorder %s25, 1
      %p161 = por %p159, %p160
      %p162 = scmp.ne.s32.totalorder %s151, %s152
      %p163 = scmp.eq.s32.totalorder %s25, 0
      %p164 = por %p162, %p163
      %p165 = scmp.ne.s32.totalorder %s151, %s152
      %p166 = scmp.eq.s32.totalorder %s26, 1
      %p167 = por %p165, %p166
      %p169 = scmp.ne.s32.totalorder %s152, %s168
      %p170 = scmp.eq.s32.totalorder %s26, 0
      %p171 = por %p169, %p170
      %s172 = ssub.s32 %s27, %s39
      %s173 = ssub.s32 %s28, %s35
      %s174 = sor.u32 %s172, %s173
      %p175 = scmp.eq.s32.totalorder %s174, 0
      %s177 = sadd.s32 %s176, 1
      %s178 = scalar_select %p175, %s176, %s177
      %p181 = pneg %p175
      %p182 = scmp.eq.s32.totalorder %s20, 1
      %p183 = por %p181, %p182
      %p184 = scmp.ne.s32.totalorder %s176, %s179
      %p185 = scmp.eq.s32.totalorder %s20, 0
      %p186 = por %p184, %p185
      %p187 = scmp.ne.s32.totalorder %s176, %s179
      %p188 = scmp.eq.s32.totalorder %s25, 1
      %p189 = por %p187, %p188
      %p190 = scmp.ne.s32.totalorder %s179, %s180
      %p191 = scmp.eq.s32.totalorder %s25, 0
      %p192 = por %p190, %p191
      %p193 = scmp.ne.s32.totalorder %s179, %s180
      %p194 = scmp.eq.s32.totalorder %s26, 1
      %p195 = por %p193, %p194
      %p197 = scmp.ne.s32.totalorder %s180, %s196
      %p198 = scmp.eq.s32.totalorder %s26, 0
      %p199 = por %p197, %p198
      %p200 = scmp.le.s32.totalorder 1, %s20
      %p201 = scmp.lt.s32.totalorder %s20, 3
      %p202 = pnand %p200, %p201
      %p203 = pneg %p202
      // Predicated region
      $region9: #{mlp2_stacked.1} parent=5 // pred_check
        _
      $region10: #{mlp2_stacked.1} parent=5 // pred_check_branch
        %205 = sbr.rel (%p202) target = $region12
      $region11: #{mlp2_stacked.1} parent=5 // pred_region
        %s206 = ssub.s32 %s20, 1
      $region12: #{mlp2_stacked.1} parent=5 // pred_fallthru
        _
      %p207 = scmp.lt.s32.totalorder %s20, 2
      // Predicated region
      $region13: #{mlp2_stacked.1} parent=5 // pred_check
        %p208 = pneg %p207
      $region14: #{mlp2_stacked.1} parent=5 // pred_check_branch
        %210 = sbr.rel (%p208) target = $region16
      $region15: #{mlp2_stacked.1} parent=5 // pred_region
        // Predicated region
        $region17: #{mlp2_stacked.1} parent=15 // pred_check
          %p211 = pneg %p54
        $region18: #{mlp2_stacked.1} parent=15 // pred_check_branch
          %213 = sbr.rel (%p211) target = $region20
        $region19: #{mlp2_stacked.1} parent=15 // pred_region
          %s214 = sand.u32 %s44, 1
          %s215 = scalar_lea.sflag [#allocation3], %s214
          %s216 = sand.u32 %s44, 1
          %s217 = smul.addr %s216, 32
          %s218 = scalar_lea.vmem [#allocation2], %s217
          %s219 = smul.u32 4, %s28
          %221 = vsyncadd %s215, 0
          %s222 = smul.addr %s27, 4
          %s223 = sadd.s32 %s219, %s222
          %s224 = smul.addr %s223, 8
          %s225 = scalar_lea.hbm %s0, %s224
          %s226 = sshll.u32 %s225, 4
          %s227 = int_to_ptr.hbm [resolvable:$true] %s226
          %s228 = sshll.u32 %s218, 4
          %s229 = int_to_ptr.vmem [resolvable:$true] %s228
          %234 = dma.hbm_to_vmem [thread:$0]  %s227, 512, %s229, %s215, 128, 128, 8
        $region20: #{mlp2_stacked.1} parent=15 // pred_fallthru
          _
        // Predicated region
        $region21: #{mlp2_stacked.1} parent=15 // pred_check
          %p235 = pneg %p80
        $region22: #{mlp2_stacked.1} parent=15 // pred_check_branch
          %237 = sbr.rel (%p235) target = $region24
        $region23: #{mlp2_stacked.1} parent=15 // pred_region
          %s238 = sand.u32 %s20, 1
          %s239 = scalar_lea.sflag [#allocation5], %s238
          %s240 = sand.u32 %s70, 1
          %s241 = smul.addr %s240, 32
          %s242 = scalar_lea.vmem [#allocation4], %s241
          %244 = vsyncadd %s239, 0
          %s245 = smul.addr %s27, 8
          %s246 = smul.addr %s245, 4
          %s247 = scalar_lea.hbm %s1, %s246
          %s248 = sshll.u32 %s247, 4
          %s249 = int_to_ptr.hbm [resolvable:$true] %s248
          %s250 = sshll.u32 %s242, 4
          %s251 = int_to_ptr.vmem [resolvable:$true] %s250
          %256 = dma.hbm_to_vmem [thread:$0]  %s249, 512, %s251, %s239, 64, 64, 4
        $region24: #{mlp2_stacked.1} parent=15 // pred_fallthru
          _
        // Predicated region
        $region25: #{mlp2_stacked.1} parent=15 // pred_check
          %p257 = pneg %p106
        $region26: #{mlp2_stacked.1} parent=15 // pred_check_branch
          %259 = sbr.rel (%p257) target = $region28
        $region27: #{mlp2_stacked.1} parent=15 // pred_region
          %s260 = sand.u32 %s20, 1
          %s261 = scalar_lea.sflag [#allocation5], %s260
          %s262 = sand.u32 %s96, 1
          %s263 = scalar_lea.vmem [#allocation6], %s262
          %265 = vsyncadd %s261, 0
          %s266 = scalar_lea.hbm %s2, %s27
          %s268 = sshll.u32 %s266, 4
          %s269 = int_to_ptr.hbm [resolvable:$true] %s268
          %s270 = sshll.u32 %s263, 4
          %s271 = int_to_ptr.vmem [resolvable:$true] %s270
          %273 = dma.hbm_to_vmem [thread:$0]  %s269, 16, %s271, %s261
        $region28: #{mlp2_stacked.1} parent=15 // pred_fallthru
          _
        // Predicated region
        $region29: #{mlp2_stacked.1} parent=15 // pred_check
          %p274 = pneg %p132
        $region30: #{mlp2_stacked.1} parent=15 // pred_check_branch
          %276 = sbr.rel (%p274) target = $region32
        $region31: #{mlp2_stacked.1} parent=15 // pred_region
          %s277 = sand.u32 %s122, 1
          %s278 = scalar_lea.sflag [#allocation8], %s277
          %s279 = sand.u32 %s122, 1
          %s280 = smul.addr %s279, 64
          %s281 = scalar_lea.vmem [#allocation7], %s280
          %283 = vsyncadd %s278, 0
          %s284 = smul.addr %s27, 16
          %s285 = smul.addr %s284, 4
          %s286 = scalar_lea.hbm %s3, %s285
          %s287 = sshll.u32 %s286, 4
          %s288 = int_to_ptr.hbm [resolvable:$true] %s287
          %s289 = sshll.u32 %s281, 4
          %s290 = int_to_ptr.vmem [resolvable:$true] %s289
          %295 = dma.hbm_to_vmem [thread:$0]  %s288, 1024, %s290, %s278, 64, 64, 4
        $region32: #{mlp2_stacked.1} parent=15 // pred_fallthru
          _
        // Predicated region
        $region33: #{mlp2_stacked.1} parent=15 // pred_check
          %p296 = pneg %p158
        $region34: #{mlp2_stacked.1} parent=15 // pred_check_branch
          %298 = sbr.rel (%p296) target = $region36
        $region35: #{mlp2_stacked.1} parent=15 // pred_region
          %p299 = scmp.lt.s32.totalorder %s27, 1
          %s300 = scalar_select %p299, %s27, 1
          %s301 = scalar_lea.vmem %s4, %s300
        $region36: #{mlp2_stacked.1} parent=15 // pred_fallthru
          _
      $region16: #{mlp2_stacked.1} parent=5 // pred_fallthru
        _
      %p302 = scmp.le.s32.totalorder 1, %s20
      %p303 = scmp.lt.s32.totalorder %s20, 3
      %p304 = pnand %p302, %p303
      %p305 = pneg %p304
      // Predicated region
      $region37: #{mlp2_stacked.1} parent=5 // pred_check
        _
      $region38: #{mlp2_stacked.1} parent=5 // pred_check_branch
        %307 = sbr.rel (%p304) target = $region40
      $region39: #{mlp2_stacked.1} parent=5 // pred_region
        %s308 = ssub.s32 %s20, 1
        %s309 = sand.u32 %s47, 1
        %s310 = scalar_lea.sflag [#allocation3], %s309
        %s311 = sand.u32 %s47, 1
        %s312 = smul.addr %s311, 32
        %s313 = scalar_lea.vmem [#allocation2], %s312
        // Predicated region
        $region41: #{mlp2_stacked.1} parent=39 // pred_check
          %p314 = pneg %p60
        $region42: #{mlp2_stacked.1} parent=39 // pred_check_branch
          %316 = sbr.rel (%p314) target = $region44
        $region43: #{mlp2_stacked.1} parent=39 // pred_region
          %318 = dma.done %s310, 512
        $region44: #{mlp2_stacked.1} parent=39 // pred_fallthru
          _
        %s319 = sand.u32 %s25, 1
        %s320 = scalar_lea.sflag [#allocation5], %s319
        %s321 = sand.u32 %s73, 1
        %s322 = smul.addr %s321, 32
        %s323 = scalar_lea.vmem [#allocation4], %s322
        // Predicated region
        $region45: #{mlp2_stacked.1} parent=39 // pred_check
          %p324 = pneg %p86
        $region46: #{mlp2_stacked.1} parent=39 // pred_check_branch
          %326 = sbr.rel (%p324) target = $region48
        $region47: #{mlp2_stacked.1} parent=39 // pred_region
          %328 = dma.done %s320, 512
        $region48: #{mlp2_stacked.1} parent=39 // pred_fallthru
          _
        %s329 = sand.u32 %s25, 1
        %s330 = scalar_lea.sflag [#allocation5], %s329
        %s331 = sand.u32 %s99, 1
        %s332 = scalar_lea.vmem [#allocation6], %s331
        // Predicated region
        $region49: #{mlp2_stacked.1} parent=39 // pred_check
          %p333 = pneg %p112
        $region50: #{mlp2_stacked.1} parent=39 // pred_check_branch
          %335 = sbr.rel (%p333) target = $region52
        $region51: #{mlp2_stacked.1} parent=39 // pred_region
          %337 = dma.done %s330, 16
        $region52: #{mlp2_stacked.1} parent=39 // pred_fallthru
          _
        %s338 = sand.u32 %s125, 1
        %s339 = scalar_lea.sflag [#allocation8], %s338
        %s340 = sand.u32 %s125, 1
        %s341 = smul.addr %s340, 64
        %s342 = scalar_lea.vmem [#allocation7], %s341
        // Predicated region
        $region53: #{mlp2_stacked.1} parent=39 // pred_check
          %p343 = pneg %p138
        $region54: #{mlp2_stacked.1} parent=39 // pred_check_branch
          %345 = sbr.rel (%p343) target = $region56
        $region55: #{mlp2_stacked.1} parent=39 // pred_region
          %347 = dma.done %s339, 1024
        $region56: #{mlp2_stacked.1} parent=39 // pred_fallthru
          _
        %s348 = sand.u32 %s47, 1
        %s349 = scalar_lea.sflag [#allocation3], %s348
        %s350 = sand.u32 %s47, 1
        %s351 = smul.addr %s350, 32
        %s352 = scalar_lea.vmem [#allocation2], %s351
        %p353 = pneg %p60
        %p354 = pneg %p57
        %s355 = sand.u32 %s25, 1
        %s356 = scalar_lea.sflag [#allocation5], %s355
        %s357 = sand.u32 %s73, 1
        %s358 = smul.addr %s357, 32
        %s359 = scalar_lea.vmem [#allocation4], %s358
        %p360 = pneg %p86
        %p361 = pneg %p83
        %s362 = sand.u32 %s25, 1
        %s363 = scalar_lea.sflag [#allocation5], %s362
        %s364 = sand.u32 %s99, 1
        %s365 = scalar_lea.vmem [#allocation6], %s364
        %p366 = pneg %p112
        %p367 = pneg %p109
        %s368 = sand.u32 %s125, 1
        %s369 = scalar_lea.sflag [#allocation8], %s368
        %s370 = sand.u32 %s125, 1
        %s371 = smul.addr %s370, 64
        %s372 = scalar_lea.vmem [#allocation7], %s371
        %p373 = pneg %p138
        %p374 = pneg %p135
        %p375 = scmp.lt.s32.totalorder %s29, 1
        %s376 = scalar_select %p375, %s29, 1
        %s377 = scalar_lea.vmem %s4, %s376
        %p378 = pneg %p164
        %p379 = pneg %p161
        %p380 = pneg %p192
        %p381 = pneg %p189
        %s382 = smul.u32 4, %s30
        %p383 = scmp.lt.s32.totalorder %s29, 1
        %s384 = scalar_select %p383, %s29, 1
        %p385 = scmp.lt.s32.totalorder %s382, 3
        %s386 = scalar_select %p385, %s382, 3
        %s387 = smul.addr %s384, 4
        %s388 = sadd.s32 %s386, %s387
        %s389 = smul.addr %s388, 8
        %s390 = scalar_lea.vmem %s5, %s389
        %s391 = smul.u32 4, %s30
        %p392 = scmp.lt.s32.totalorder %s29, 1
        %s393 = scalar_select %p392, %s29, 1
        %s394 = scalar_lea.vmem %s4, %s393
        %s395 = smul.u32 4, %s30
        %p396 = scmp.lt.s32.totalorder %s29, 1
        %s397 = scalar_select %p396, %s29, 1
        %p398 = scmp.lt.s32.totalorder %s395, 3
        %s399 = scalar_select %p398, %s395, 3
        %s400 = smul.addr %s397, 4
        %s401 = sadd.s32 %s399, %s400
        %s402 = smul.addr %s401, 8
        %s403 = scalar_lea.vmem %s5, %s402
        %s404 = smul.u32 4, %s30
        %v406 = vld [vmem:[%s313] sm:$0xff]
        %v407 = vld [vmem:[%s313 + $0x8] sm:$0xff]
        %v408 = vld [vmem:[%s313 + $0x10] sm:$0xff]
        %v409 = vld [vmem:[%s313 + $0x18] sm:$0xff]
        %v410 = vpack.c.bf16 %v407, %v406
        %v411 = vpack.c.bf16 %v409, %v408
        %v412 = vld [vmem:[%s323] sm:$0xf]
        %v413 = vld [vmem:[%s323 + $0x4] sm:$0xf]
        %v414 = vld [vmem:[%s323 + $0x8] sm:$0xf]
        %v415 = vld [vmem:[%s323 + $0xc] sm:$0xf]
        %v416 = vld [vmem:[%s323 + $0x10] sm:$0xf]
        %v417 = vld [vmem:[%s323 + $0x14] sm:$0xf]
        %v418 = vld [vmem:[%s323 + $0x18] sm:$0xf]
        %v419 = vld [vmem:[%s323 + $0x1c] sm:$0xf]
        %v420 = vld [vmem:[%s332] sm:$0x1]
        %v422 = vperm.slane %v420, 0
        %v432 = vunpack.c.l.b16 %v412
        %v433 = vunpack.c.l.b16 %v413
        %v434 = vunpack.c.l.b16 %v414
        %v435 = vunpack.c.l.b16 %v415
        %v436 = vunpack.c.l.b16 %v416
        %v437 = vunpack.c.l.b16 %v417
        %v438 = vunpack.c.l.b16 %v418
        %v439 = vunpack.c.l.b16 %v419
        %v440 = vpack.c.b16 %v433, %v432
        %v441 = vpack.c.b16 %v435, %v434
        %v442 = vpack.c.b16 %v437, %v436
        %v443 = vpack.c.b16 %v439, %v438
        %vm448 = vcmask 523264
        %v450 = vsel %vm448, %v410, 0
        %v453 = vsel %vm448, %v411, 0
        %455 = vmatpush.bf16.msra.mxu0 0
        %456 = vmatpush.bf16.msra.mxu0 0
        %457 = vmatpush.bf16.msra.mxu0 0
        %458 = vmatpush.bf16.msra.mxu0 0
        %459 = vmatpush.bf16.msra.mxu0 %v443
        %460 = vmatpush.bf16.msra.mxu0 %v442
        %461 = vmatpush.bf16.msra.mxu0 %v441
        %462 = vmatpush.bf16.msra.mxu0 %v440
        %463 = vmatmul.bf16.gmra.mxu0 %v450
        %v464 = vpop.f32.mrf.mxu0
        %v465 = vadd.f32 %v422, %v464
        %v466 = vpop.f32.mrf.mxu0
        %v467 = vadd.f32 %v422, %v466
        %468 = vmatmul.bf16.gmra.mxu0 %v453
        %v469 = vpop.f32.mrf.mxu0
        %v470 = vadd.f32 %v422, %v469
        %v471 = vpop.f32.mrf.mxu0
        %v472 = vadd.f32 %v422, %v471
        %473 = vdwg.mxu0
        %v474 = vmax.f32 %v465, 0.0
        %v475 = vmax.f32 %v467, 0.0
        %v476 = vmax.f32 %v470, 0.0
        %v477 = vmax.f32 %v472, 0.0
        %v478 = vpack.c.bf16 %v475, %v474
        %v479 = vpack.c.bf16 %v477, %v476
        %v480 = vld [vmem:[%s342] sm:$0xf]
        %v481 = vld [vmem:[%s342 + $0x4] sm:$0xf]
        %v482 = vld [vmem:[%s342 + $0x8] sm:$0xf]
        %v483 = vld [vmem:[%s342 + $0xc] sm:$0xf]
        %v484 = vld [vmem:[%s342 + $0x10] sm:$0xf]
        %v485 = vld [vmem:[%s342 + $0x14] sm:$0xf]
        %v486 = vld [vmem:[%s342 + $0x18] sm:$0xf]
        %v487 = vld [vmem:[%s342 + $0x1c] sm:$0xf]
        %v488 = vld [vmem:[%s342 + $0x20] sm:$0xf]
        %v489 = vld [vmem:[%s342 + $0x24] sm:$0xf]
        %v490 = vld [vmem:[%s342 + $0x28] sm:$0xf]
        %v491 = vld [vmem:[%s342 + $0x2c] sm:$0xf]
        %v492 = vld [vmem:[%s342 + $0x30] sm:$0xf]
        %v493 = vld [vmem:[%s342 + $0x34] sm:$0xf]
        %v494 = vld [vmem:[%s342 + $0x38] sm:$0xf]
        %v495 = vld [vmem:[%s342 + $0x3c] sm:$0xf]
        %v496 = vld [vmem:[%s394] sm:$0x1]
        %v498 = vperm.slane %v496, 0
        %v516 = vunpack.c.l.b16 %v480
        %v517 = vunpack.c.l.b16 %v481
        %v518 = vunpack.c.l.b16 %v482
        %v519 = vunpack.c.l.b16 %v483
        %v520 = vunpack.c.l.b16 %v484
        %v521 = vunpack.c.l.b16 %v485
        %v522 = vunpack.c.l.b16 %v486
        %v523 = vunpack.c.l.b16 %v487
        %v524 = vunpack.c.l.b16 %v488
        %v525 = vunpack.c.l.b16 %v489
        %v526 = vunpack.c.l.b16 %v490
        %v527 = vunpack.c.l.b16 %v491
        %v528 = vunpack.c.l.b16 %v492
        %v529 = vunpack.c.l.b16 %v493
        %v530 = vunpack.c.l.b16 %v494
        %v531 = vunpack.c.l.b16 %v495
        %v532 = vpack.c.b16 %v517, %v516
        %v533 = vpack.c.b16 %v519, %v518
        %v534 = vpack.c.b16 %v521, %v520
        %v535 = vpack.c.b16 %v523, %v522
        %v536 = vpack.c.b16 %v525, %v524
        %v537 = vpack.c.b16 %v527, %v526
        %v538 = vpack.c.b16 %v529, %v528
        %v539 = vpack.c.b16 %v531, %v530
        %548 = vmatpush.bf16.msra.mxu0 %v539
        %549 = vmatpush.bf16.msra.mxu0 %v538
        %550 = vmatpush.bf16.msra.mxu0 %v537
        %551 = vmatpush.bf16.msra.mxu0 %v536
        %552 = vmatpush.bf16.msra.mxu0 %v535
        %553 = vmatpush.bf16.msra.mxu0 %v534
        %554 = vmatpush.bf16.msra.mxu0 %v533
        %555 = vmatpush.bf16.msra.mxu0 %v532
        %556 = vmatmul.bf16.gmra.mxu0 %v478
        %v557 = vpop.f32.mrf.mxu0
        %v558 = vadd.f32 %v498, %v557
        %v559 = vpop.f32.mrf.mxu0
        %v560 = vadd.f32 %v498, %v559
        %561 = vmatmul.bf16.gmra.mxu0 %v479
        %v562 = vpop.f32.mrf.mxu0
        %v563 = vadd.f32 %v498, %v562
        %v564 = vpop.f32.mrf.mxu0
        %v565 = vadd.f32 %v498, %v564
        %566 = vdwg.mxu0
        %567 = vst [vmem:[%s403] sm:$0xff] %v558
        %568 = vst [vmem:[%s403 + $0x8] sm:$0xff] %v560
        %569 = vst [vmem:[%s403 + $0x10] sm:$0xff] %v563
        %570 = vst [vmem:[%s403 + $0x18] sm:$0xff] %v565
        %s571 = smul.u32 4, %s30
        %p572 = scmp.lt.s32.totalorder %s29, 1
        %s573 = scalar_select %p572, %s29, 1
        %p574 = scmp.lt.s32.totalorder %s571, 3
        %s575 = scalar_select %p574, %s571, 3
        %s576 = smul.addr %s573, 4
        %s577 = sadd.s32 %s575, %s576
        %s578 = smul.addr %s577, 8
        %s579 = scalar_lea.vmem %s5, %s578
        // Predicated region
        $region57: #{mlp2_stacked.1} parent=39 // pred_check
          %p580 = pneg %p189
        $region58: #{mlp2_stacked.1} parent=39 // pred_check_branch
          %582 = sbr.rel (%p580) target = $region60
        $region59: #{mlp2_stacked.1} parent=39 // pred_region
          %s583 = smul.u32 4, %s30
        $region60: #{mlp2_stacked.1} parent=39 // pred_fallthru
          _
      $region40: #{mlp2_stacked.1} parent=5 // pred_fallthru
        _
      %p584 = scmp.le.s32.totalorder 2, %s20
      // Predicated region
      $region61: #{mlp2_stacked.1} parent=5 // pred_check
        %p585 = pneg %p584
      $region62: #{mlp2_stacked.1} parent=5 // pred_check_branch
        %587 = sbr.rel (%p585) target = $region64
      $region63: #{mlp2_stacked.1} parent=5 // pred_region
        %s588 = ssub.s32 %s20, 2
        // Predicated region
        $region65: #{mlp2_stacked.1} parent=63 // pred_check
          %p589 = pneg %p195
        $region66: #{mlp2_stacked.1} parent=63 // pred_check_branch
          %591 = sbr.rel (%p589) target = $region68
        $region67: #{mlp2_stacked.1} parent=63 // pred_region
          %s592 = smul.u32 4, %s32
          %p593 = scmp.lt.s32.totalorder %s31, 1
          %s594 = scalar_select %p593, %s31, 1
          %p595 = scmp.lt.s32.totalorder %s592, 3
          %s596 = scalar_select %p595, %s592, 3
          %s597 = smul.addr %s594, 4
          %s598 = sadd.s32 %s596, %s597
          %s599 = smul.addr %s598, 8
          %s600 = scalar_lea.vmem %s5, %s599
        $region68: #{mlp2_stacked.1} parent=63 // pred_fallthru
          _
      $region64: #{mlp2_stacked.1} parent=5 // pred_fallthru
        _
    $region6: #{mlp2_stacked.1} parent=1 // loop_footer
      %s24 = sadd.s32 1, %s20
    $region7: #{mlp2_stacked.1} parent=1 // loop_footer_branch
      %19 = sbr.rel target = $region3
    $region8: #{mlp2_stacked.1} parent=1 // loop_exit
      _
    %601 = vsyncpa [#allocation3], 1
    %s602 = scalar_lea.sflag [#allocation3], 1
    %603 = vsyncpa %s602, 1
    %604 = vsyncpa [#allocation5], 1
    %s605 = scalar_lea.sflag [#allocation5], 1
    %606 = vsyncpa %s605, 1
    %607 = vsyncpa [#allocation8], 1
    %s608 = scalar_lea.sflag [#allocation8], 1
    %609 = vsyncpa %s608, 1

</llo_original>
